<compile_context>
chip_gen: v7x
topology: tpu7x:2x2x1
jax: 0.10.0
libtpu: 0.0.40
codegen_flags: <defaults>
</compile_context>

<pallas_src>
import math

import jax
import jax.numpy as jnp
from jax import lax
from jax.experimental import pallas as pl
from jax.experimental.pallas import tpu as pltpu


def _attention_head_kernel(x_ref, w_ref, mask_ref, o_ref):
    """One grid step == one batch element.

    x_ref   : (1, N, H)  bf16  activations for this batch element
    w_ref   : (H, 3*EP)  bf16  fused [q*scale | k | v] weights, each padded to EP lanes
    mask_ref: (N, N)     f32   additive mask (0 keep, -inf masked) hoisted to wrapper
    o_ref   : (1, N, EP) f32   lane-dense output slab; sliced back to E outside
    """
    ep = o_ref.shape[-1]

    # One fused projection: a single MXU push instead of three, bf16 operands,
    # f32 accumulation.
    proj = jnp.dot(x_ref[0], w_ref[...], preferred_element_type=jnp.float32)  # (N, 3*EP)

    q = proj[:, 0 * ep:1 * ep]   # queries, already scaled by 1/sqrt(E)
    k = proj[:, 1 * ep:2 * ep]   # keys
    v = proj[:, 2 * ep:3 * ep]   # values (padded cols are zero)

    # scores[i, j] = q_i . k_j  -- contract directly on the embedding axis so
    # no keys.T is materialized (no XLU transpose). Zero-padded lanes add 0.
    # At N=8 this matmul is noise; at large N cast q/k (and attn/v below) to
    # bf16 as well for MXU rate.
    scores = lax.dot_general(
        q, k,
        dimension_numbers=(((1,), (1,)), ((), ())),
        preferred_element_type=jnp.float32)                     # (N, N)

    scores = scores + mask_ref[...]    # -inf on strictly-lower triangle (j < i)

    # Softmax over the key axis, all in f32 (safe on v5e too).
    m = jnp.max(scores, axis=-1, keepdims=True)
    p = jnp.exp(scores - m)
    denom = jnp.sum(p, axis=-1, keepdims=True)
    attn = p * pl.reciprocal(denom, approx=True)                # EUP slot, ~free

    o_ref[0] = jnp.dot(attn, v, preferred_element_type=jnp.float32).astype(o_ref.dtype)


def attention_head(x, k, q, v):
    """x: (B, N, H) f32; k/q/v: (H, E) f32 -> (B, N, E) f32."""
    B, N, H = x.shape
    H2, E = k.shape
    assert H == H2 and q.shape == (H, E) and v.shape == (H, E)

    # Pad each projection out to a full 128-lane slab so every in-kernel slice
    # is vreg-aligned and the output store is lane-dense.
    EP = ((E + 127) // 128) * 128
    pad = ((0, 0), (0, EP - E))
    scale = 1.0 / math.sqrt(E)

    # Fold the 1/sqrt(E) scale into the query weight and fuse q|k|v into one
    # (H, 3*EP) weight -> one projection matmul, one weight DMA.
    w_fused = jnp.concatenate(
        [jnp.pad(q * scale, pad), jnp.pad(k, pad), jnp.pad(v, pad)], axis=1)

    # bf16 operands for the MXU; accumulation stays f32 inside the kernel.
    x_bf = x.astype(jnp.bfloat16)
    w_bf = w_fused.astype(jnp.bfloat16)

    # Mask hoisted out of the kernel: -inf where key index j < query index i
    # (matches ~triu in the reference: attend to self + future positions).
    j_idx = jnp.arange(N)[None, :]
    i_idx = jnp.arange(N)[:, None]
    mask = jnp.where(j_idx < i_idx, -jnp.inf, 0.0).astype(jnp.float32)

    grid_spec = pltpu.PrefetchScalarGridSpec(
        num_scalar_prefetch=0,
        grid=(B,),   # kept "parallel" so v7x's two TensorCores each take a batch
        in_specs=[
            pl.BlockSpec((1, N, H), lambda b: (b, 0, 0)),
            pl.BlockSpec((H, 3 * EP), lambda b: (0, 0)),
            pl.BlockSpec((N, N), lambda b: (0, 0)),
        ],
        out_specs=pl.BlockSpec((1, N, EP), lambda b: (b, 0, 0)),
    )

    cost = pl.CostEstimate(
        flops=2 * B * (N * H * 3 * EP + 2 * N * N * EP),
        transcendentals=B * N * N,
        bytes_accessed=(x_bf.size * x_bf.dtype.itemsize
                        + w_bf.size * w_bf.dtype.itemsize
                        + mask.size * 4
                        + B * N * EP * 4),
    )

    out_padded = pl.pallas_call(
        _attention_head_kernel,
        out_shape=jax.ShapeDtypeStruct((B, N, EP), jnp.float32),
        grid_spec=grid_spec,
        compiler_params=pltpu.CompilerParams(dimension_semantics=("parallel",)),
        cost_estimate=cost,
    )(x_bf, w_bf, mask)

    # Drop the lane padding outside the kernel (layout plumbing, not compute).
    return out_padded[..., :E]


def xavier_uniform(key, fan_in, fan_out, dtype=jnp.float32):
    bound = math.sqrt(6.0 / (fan_in + fan_out))
    return jax.random.uniform(key, (fan_in, fan_out), dtype=dtype,
                              minval=-bound, maxval=bound)


def reference(x, k, q, v):
    """Pure-JAX f32 reference matching the PyTorch module's intent."""
    keys = jnp.einsum("bnh,he->bne", x, k)
    queries = jnp.einsum("bnh,he->bne", x, q)
    values = jnp.einsum("bnh,he->bne", x, v)
    scores = jnp.einsum("bie,bje->bij", queries, keys) / math.sqrt(k.shape[1])
    n = x.shape[1]
    msk = ~jnp.triu(jnp.ones((n, n), dtype=bool))  # strictly lower triangle
    scores = jnp.where(msk[None], -jnp.inf, scores)
    attn = jax.nn.softmax(scores, axis=2)
    return jnp.einsum("bij,bje->bie", attn, values)


if __name__ == "__main__":
    B, N, H, E = 2, 8, 32, 32  # batch, seq, input_size, embedding_size

    key = jax.random.PRNGKey(0)
    kx, kk, kq, kv = jax.random.split(key, 4)

    x = jax.random.normal(kx, (B, N, H), dtype=jnp.float32)
    k_w = xavier_uniform(kk, H, E)
    q_w = xavier_uniform(kq, H, E)
    v_w = xavier_uniform(kv, H, E)

    out = attention_head(x, k_w, q_w, v_w)
    out = jax.block_until_ready(out)

    ref = reference(x, k_w, q_w, v_w)
    assert out.shape == (B, N, E)
    # bf16 operands on the fused projection matmul loosen the match vs the
    # pure-f32 reference from ~1e-6 to ~1e-2; tolerance set accordingly.
    assert jnp.allclose(out, ref, atol=5e-2, rtol=5e-2), "mismatch vs reference"

    print("KERNEL_OK")
</pallas_src>

<mosaic_0001>
module attributes {stable_mosaic.version = 11 : i64} {
  func.func @_attention_head_kernel(%arg0: i32, %arg1: memref<1x8x32xbf16, #tpu.memory_space<vmem>>, %arg2: memref<32x384xbf16, #tpu.memory_space<vmem>>, %arg3: memref<8x8xf32, #tpu.memory_space<vmem>>, %arg4: memref<1x8x128xf32, #tpu.memory_space<vmem>>) attributes {dimension_semantics = [#tpu.dimension_semantics<parallel>], iteration_bounds = array<i64: 2>, scalar_prefetch = 0 : i64, scratch_operands = 0 : i64, tpu.core_type = #tpu.core_type<tc>, window_params = [{transform_indices = @transform_0, window_bounds = array<i64: 1, 8, 32>}, {pipeline_mode = #tpu.pipeline_mode<synchronous>, transform_indices = @transform_1, window_bounds = array<i64: 32, 384>}, {pipeline_mode = #tpu.pipeline_mode<synchronous>, transform_indices = @transform_2, window_bounds = array<i64: 8, 8>}, {transform_indices = @transform_3, window_bounds = array<i64: 1, 8, 128>}]} {
    %c0 = arith.constant 0 : index
    %c0_0 = arith.constant 0 : index
    %c0_1 = arith.constant 0 : index
    %0 = vector.load %arg1[%c0, %c0_0, %c0_1] : memref<1x8x32xbf16, #tpu.memory_space<vmem>>, vector<1x8x32xbf16>
    %1 = vector.shape_cast %0 : vector<1x8x32xbf16> to vector<8x32xbf16>
    %c0_2 = arith.constant 0 : index
    %c0_3 = arith.constant 0 : index
    %2 = vector.load %arg2[%c0_2, %c0_3] : memref<32x384xbf16, #tpu.memory_space<vmem>>, vector<32x384xbf16>
    %cst = arith.constant dense<0.000000e+00> : vector<8x384xf32>
    %3 = tpu.matmul %1, %2, %cst {dimension_numbers = #tpu.dot_dimension_numbers<[1], [0], [0], [1], [0, 0, 1, 1], [], []>} : vector<8x32xbf16>, vector<32x384xbf16>, vector<8x384xf32> -> vector<8x384xf32>
    %4 = vector.extract_strided_slice %3 {offsets = [0, 0], sizes = [8, 128], strides = [1, 1]} : vector<8x384xf32> to vector<8x128xf32>
    %5 = vector.extract_strided_slice %3 {offsets = [0, 128], sizes = [8, 128], strides = [1, 1]} : vector<8x384xf32> to vector<8x128xf32>
    %6 = vector.extract_strided_slice %3 {offsets = [0, 256], sizes = [8, 128], strides = [1, 1]} : vector<8x384xf32> to vector<8x128xf32>
    %cst_4 = arith.constant dense<0.000000e+00> : vector<8x8xf32>
    %7 = tpu.matmul %4, %5, %cst_4 {dimension_numbers = #tpu.dot_dimension_numbers<[1], [1], [0], [0], [0, 0, 1, 0], [], []>} : vector<8x128xf32>, vector<8x128xf32>, vector<8x8xf32> -> vector<8x8xf32>
    %c0_5 = arith.constant 0 : index
    %c0_6 = arith.constant 0 : index
    %8 = vector.load %arg3[%c0_5, %c0_6] : memref<8x8xf32, #tpu.memory_space<vmem>>, vector<8x8xf32>
    %9 = arith.addf %7, %8 : vector<8x8xf32>
    %cst_7 = arith.constant dense<0xFF800000> : vector<8xf32>
    %10 = vector.multi_reduction <maximumf>, %9, %cst_7 [1] : vector<8x8xf32> to vector<8xf32>
    %11 = vector.shape_cast %10 : vector<8xf32> to vector<8x1xf32>
    %12 = vector.broadcast %11 : vector<8x1xf32> to vector<8x8xf32>
    %13 = arith.subf %9, %12 : vector<8x8xf32>
    %14 = math.exp %13 : vector<8x8xf32>
    %cst_8 = arith.constant dense<0.000000e+00> : vector<8xf32>
    %15 = vector.multi_reduction <add>, %14, %cst_8 [1] : vector<8x8xf32> to vector<8xf32>
    %16 = vector.shape_cast %15 : vector<8xf32> to vector<8x1xf32>
    %17 = tpu.reciprocal %16 {approx = true} : vector<8x1xf32> -> vector<8x1xf32>
    %18 = vector.broadcast %17 : vector<8x1xf32> to vector<8x8xf32>
    %19 = arith.mulf %14, %18 : vector<8x8xf32>
    %cst_9 = arith.constant dense<0.000000e+00> : vector<8x128xf32>
    %20 = tpu.matmul %19, %6, %cst_9 {dimension_numbers = #tpu.dot_dimension_numbers<[1], [0], [0], [1], [0, 0, 1, 1], [], []>} : vector<8x8xf32>, vector<8x128xf32>, vector<8x128xf32> -> vector<8x128xf32>
    %c0_10 = arith.constant 0 : index
    %c0_11 = arith.constant 0 : index
    %c0_12 = arith.constant 0 : index
    %21 = vector.load %arg4[%c0_10, %c0_11, %c0_12] : memref<1x8x128xf32, #tpu.memory_space<vmem>>, vector<1x8x128xf32>
    %22 = vector.shape_cast %21 : vector<1x8x128xf32> to vector<8x128xf32>
    %23 = vector.shape_cast %20 : vector<8x128xf32> to vector<1x8x128xf32>
    tpu.vector_store %arg4[%c0_10, %c0_11, %c0_12], %23 {strides = array<i32>} : memref<1x8x128xf32, #tpu.memory_space<vmem>>, vector<1x8x128xf32>,
    return
  }
  func.func @transform_0(%arg0: i32) -> (i32, i32, i32) {
    %c0_i32 = arith.constant 0 : i32
    %c0_i32_0 = arith.constant 0 : i32
    %c0_i32_1 = arith.constant 0 : i32
    return %arg0, %c0_i32, %c0_i32_0 : i32, i32, i32
  }
  func.func @transform_1(%arg0: i32) -> (i32, i32) {
    %c0_i32 = arith.constant 0 : i32
    %c0_i32_0 = arith.constant 0 : i32
    %c0_i32_1 = arith.constant 0 : i32
    return %c0_i32, %c0_i32_0 : i32, i32
  }
  func.func @transform_2(%arg0: i32) -> (i32, i32) {
    %c0_i32 = arith.constant 0 : i32
    %c0_i32_0 = arith.constant 0 : i32
    %c0_i32_1 = arith.constant 0 : i32
    return %c0_i32, %c0_i32_0 : i32, i32
  }
  func.func @transform_3(%arg0: i32) -> (i32, i32, i32) {
    %c0_i32 = arith.constant 0 : i32
    %c0_i32_0 = arith.constant 0 : i32
    %c0_i32_1 = arith.constant 0 : i32
    return %arg0, %c0_i32, %c0_i32_0 : i32, i32, i32
  }
}

</mosaic_0001>

<llo_original>
// kernel: tpu_custom_call.1
$region0: #{tpu_custom_call.1}
  #allocation0 [shape = 'u32[]', space=smem, size = 0x4, offset = 0x4, fixed_abs, tag = 'smem constant byte address 0x4 - core index']
  #allocation1 [shape = 'u32[144,128]{1,0:T(1,128)}', space=vmem, size = 0x12000, scoped, tag = 'internal scratch']
  %s0 = inlined_call_operand.hbm [shape: bf16[2,8,32], index: 0, kind: input, shape index: {}]
  %s1 = inlined_call_operand.hbm [shape: bf16[32,384], index: 1, kind: input, shape index: {}]
  %s2 = inlined_call_operand.hbm [shape: f32[8,8], index: 2, kind: input, shape index: {}]
  %s3 = inlined_call_operand.hbm [shape: f32[2,8,128], index: 3, kind: output, shape index: {}]
  %s4 = sld [smem:[#allocation0]]
  $region57: #{tpu_custom_call.1} parent=0
    _
  %s6 = ssub.s32 1, %s4
  %s7 = scalar_select 0, %s6, %s4
  $region1: #{tpu_custom_call.1} parent=0
    #allocation2 [shape = 'u8[4096]{0}', space=vmem, size = 0x1000, scoped, tag = 'input window, operand 0']
    #allocation3 [shape = 's32[2]{0}', space=sflag, size = 0x8, scoped, tag = 'scoped memory for tpu_custom_call.1']
    #allocation4 [shape = 's32[2]{0}', space=sflag, size = 0x8, scoped, tag = 'scoped memory for tpu_custom_call.1']
    #allocation5 [shape = 'u8[24576]{0}', space=vmem, size = 0x6000, scoped, tag = 'input window, operand 1, single buffered']
    #allocation6 [shape = 's32[1]{0}', space=sflag, size = 0x4, scoped, tag = 'scoped memory for tpu_custom_call.1']
    #allocation7 [shape = 'u8[4096]{0}', space=vmem, size = 0x1000, scoped, tag = 'input window, operand 2, single buffered']
    #allocation8 [shape = 'u8[8192]{0}', space=vmem, size = 0x2000, scoped, tag = 'output window, operand 0']
    %8 = vsyncpa [#allocation3], 0
    %s9 = scalar_lea.sflag [#allocation3], 1
    %10 = vsyncpa %s9, 0
    %11 = vsyncpa [#allocation6], 0
    %12 = vsyncpa [#allocation4], 0
    %s13 = scalar_lea.sflag [#allocation4], 1
    %14 = vsyncpa %s13, 0
    loop: start=0, step=1, limit=4
    $region2: #{tpu_custom_call.1} parent=1 // loop_pre_header
      _
    $region3: #{tpu_custom_call.1} parent=1 // loop_header
      %s16 = sphi 0, %s20
      %p17 = scmp.ge.s32.totalorder %s16, 4
      %s26 = sphi 0, %s28
      %s29 = sphi 0, %s26
      %s30 = sphi 0, %s29
      %s46 = sphi 0, %s30
      %s50 = sphi 0, %s50
      %s52 = sphi 0, %s50
      %s53 = sphi 0, %s52
      %s67 = sphi 0, %s53
      %s71 = sphi 0, %s71
      %s73 = sphi 0, %s71
      %s74 = sphi 0, %s73
      %s88 = sphi 0, %s74
      %s94 = sphi 0, %s96
      %s97 = sphi 0, %s94
      %s98 = sphi 0, %s97
      %s114 = sphi 0, %s98
    $region4: #{tpu_custom_call.1} parent=1 // loop_header_branch
      %19 = sbr.rel (%p17) target = $region8
    $region5: #{tpu_custom_call.1} parent=1 // loop_body
      %s21 = ssub.s32 %s16, 1
      %s22 = ssub.s32 %s16, 2
      %s23 = sadd.s32 %s16, 1
      %s24 = ssub.s32 %s16, %s23
      %p25 = scmp.eq.s32.totalorder %s24, 0
      %s27 = sadd.s32 %s26, 1
      %s28 = scalar_select %p25, %s26, %s27
      %p31 = pneg %p25
      %p32 = scmp.eq.s32.totalorder %s16, 1
      %p33 = por %p31, %p32
      %p34 = scmp.ne.s32.totalorder %s26, %s29
      %p35 = scmp.eq.s32.totalorder %s16, 0
      %p36 = por %p34, %p35
      %p37 = scmp.ne.s32.totalorder %s26, %s29
      %p38 = scmp.eq.s32.totalorder %s21, 1
      %p39 = por %p37, %p38
      %p40 = scmp.ne.s32.totalorder %s29, %s30
      %p41 = scmp.eq.s32.totalorder %s21, 0
      %p42 = por %p40, %p41
      %p43 = scmp.ne.s32.totalorder %s29, %s30
      %p44 = scmp.eq.s32.totalorder %s22, 1
      %p45 = por %p43, %p44
      %p47 = scmp.ne.s32.totalorder %s30, %s46
      %p48 = scmp.eq.s32.totalorder %s22, 0
      %p49 = por %p47, %p48
      %s51 = sadd.s32 %s50, 1
      %p54 = scmp.eq.s32.totalorder %s16, 1
      %p55 = scmp.ne.s32.totalorder %s50, %s52
      %p56 = scmp.eq.s32.totalorder %s16, 0
      %p57 = por %p55, %p56
      %p58 = scmp.ne.s32.totalorder %s50, %s52
      %p59 = scmp.eq.s32.totalorder %s21, 1
      %p60 = por %p58, %p59
      %p61 = scmp.ne.s32.totalorder %s52, %s53
      %p62 = scmp.eq.s32.totalorder %s21, 0
      %p63 = por %p61, %p62
      %p64 = scmp.ne.s32.totalorder %s52, %s53
      %p65 = scmp.eq.s32.totalorder %s22, 1
      %p66 = por %p64, %p65
      %p68 = scmp.ne.s32.totalorder %s53, %s67
      %p69 = scmp.eq.s32.totalorder %s22, 0
      %p70 = por %p68, %p69
      %s72 = sadd.s32 %s71, 1
      %p75 = scmp.eq.s32.totalorder %s16, 1
      %p76 = scmp.ne.s32.totalorder %s71, %s73
      %p77 = scmp.eq.s32.totalorder %s16, 0
      %p78 = por %p76, %p77
      %p79 = scmp.ne.s32.totalorder %s71, %s73
      %p80 = scmp.eq.s32.totalorder %s21, 1
      %p81 = por %p79, %p80
      %p82 = scmp.ne.s32.totalorder %s73, %s74
      %p83 = scmp.eq.s32.totalorder %s21, 0
      %p84 = por %p82, %p83
      %p85 = scmp.ne.s32.totalorder %s73, %s74
      %p86 = scmp.eq.s32.totalorder %s22, 1
      %p87 = por %p85, %p86
      %p89 = scmp.ne.s32.totalorder %s74, %s88
      %p90 = scmp.eq.s32.totalorder %s22, 0
      %p91 = por %p89, %p90
      %s92 = ssub.s32 %s16, %s23
      %p93 = scmp.eq.s32.totalorder %s92, 0
      %s95 = sadd.s32 %s94, 1
      %s96 = scalar_select %p93, %s94, %s95
      %p99 = pneg %p93
      %p100 = scmp.eq.s32.totalorder %s16, 1
      %p101 = por %p99, %p100
      %p102 = scmp.ne.s32.totalorder %s94, %s97
      %p103 = scmp.eq.s32.totalorder %s16, 0
      %p104 = por %p102, %p103
      %p105 = scmp.ne.s32.totalorder %s94, %s97
      %p106 = scmp.eq.s32.totalorder %s21, 1
      %p107 = por %p105, %p106
      %p108 = scmp.ne.s32.totalorder %s97, %s98
      %p109 = scmp.eq.s32.totalorder %s21, 0
      %p110 = por %p108, %p109
      %p111 = scmp.ne.s32.totalorder %s97, %s98
      %p112 = scmp.eq.s32.totalorder %s22, 1
      %p113 = por %p111, %p112
      %p115 = scmp.ne.s32.totalorder %s98, %s114
      %p116 = scmp.eq.s32.totalorder %s22, 0
      %p117 = por %p115, %p116
      %p118 = scmp.le.s32.totalorder 1, %s16
      %p119 = scmp.lt.s32.totalorder %s16, 3
      %p120 = pnand %p118, %p119
      %p121 = pneg %p120
      // Predicated region
      $region9: #{tpu_custom_call.1} parent=5 // pred_check
        _
      $region10: #{tpu_custom_call.1} parent=5 // pred_check_branch
        %123 = sbr.rel (%p120) target = $region12
      $region11: #{tpu_custom_call.1} parent=5 // pred_region
        %s124 = ssub.s32 %s16, 1
        // Predicated region
        $region13: #{tpu_custom_call.1} parent=11 // pred_check
          %p125 = pneg %p63
        $region14: #{tpu_custom_call.1} parent=11 // pred_check_branch
          %127 = sbr.rel (%p125) target = $region16
        $region15: #{tpu_custom_call.1} parent=11 // pred_region
          %s129 = ssub.s32 768, 768
          %130 = vsyncadd [#allocation6], %s129
          %s131 = sshll.u32 [#allocation5], 4
          %s132 = int_to_ptr.vmem [resolvable:$true] %s131
          %137 = dma.hbm_to_vmem [thread:$0]  %s1, 768, %s132, [#allocation6], 192, 192, 12
        $region16: #{tpu_custom_call.1} parent=11 // pred_fallthru
          _
        // Predicated region
        $region17: #{tpu_custom_call.1} parent=11 // pred_check
          %p138 = pneg %p84
        $region18: #{tpu_custom_call.1} parent=11 // pred_check_branch
          %140 = sbr.rel (%p138) target = $region20
        $region19: #{tpu_custom_call.1} parent=11 // pred_region
          %s142 = ssub.s32 128, 128
          %143 = vsyncadd [#allocation6], %s142
          %s145 = sshll.u32 [#allocation7], 4
          %s146 = int_to_ptr.vmem [resolvable:$true] %s145
          %148 = dma.hbm_to_vmem [thread:$0]  %s2, 128, %s146, [#allocation6]
        $region20: #{tpu_custom_call.1} parent=11 // pred_fallthru
          _
      $region12: #{tpu_custom_call.1} parent=5 // pred_fallthru
        _
      %p149 = scmp.lt.s32.totalorder %s16, 2
      // Predicated region
      $region21: #{tpu_custom_call.1} parent=5 // pred_check
        %p150 = pneg %p149
      $region22: #{tpu_custom_call.1} parent=5 // pred_check_branch
        %152 = sbr.rel (%p150) target = $region24
      $region23: #{tpu_custom_call.1} parent=5 // pred_region
        // Predicated region
        $region25: #{tpu_custom_call.1} parent=23 // pred_check
          %p153 = pneg %p36
        $region26: #{tpu_custom_call.1} parent=23 // pred_check_branch
          %155 = sbr.rel (%p153) target = $region28
        $region27: #{tpu_custom_call.1} parent=23 // pred_region
          %s156 = sand.u32 %s26, 1
          %s157 = scalar_lea.sflag [#allocation3], %s156
          %s158 = sand.u32 %s26, 1
          %s159 = smul.addr %s158, 4
          %s160 = scalar_lea.vmem [#allocation2], %s159
          %s162 = ssub.s32 64, 64
          %163 = vsyncadd %s157, %s162
          %s164 = smul.addr %s16, 64
          %s165 = scalar_lea.hbm %s0, %s164
          %s167 = sshll.u32 %s160, 4
          %s168 = int_to_ptr.vmem [resolvable:$true] %s167
          %170 = dma.hbm_to_vmem [thread:$0]  %s165, 64, %s168, %s157
        $region28: #{tpu_custom_call.1} parent=23 // pred_fallthru
          _
      $region24: #{tpu_custom_call.1} parent=5 // pred_fallthru
        _
      %p171 = scmp.le.s32.totalorder 1, %s16
      %p172 = scmp.lt.s32.totalorder %s16, 3
      %p173 = pnand %p171, %p172
      %p174 = pneg %p173
      // Predicated region
      $region29: #{tpu_custom_call.1} parent=5 // pred_check
        _
      $region30: #{tpu_custom_call.1} parent=5 // pred_check_branch
        %176 = sbr.rel (%p173) target = $region32
      $region31: #{tpu_custom_call.1} parent=5 // pred_region
        %s177 = ssub.s32 %s16, 1
        %s178 = sand.u32 %s29, 1
        %s179 = scalar_lea.sflag [#allocation3], %s178
        %s180 = sand.u32 %s29, 1
        %s181 = smul.addr %s180, 4
        %s182 = scalar_lea.vmem [#allocation2], %s181
        // Predicated region
        $region33: #{tpu_custom_call.1} parent=31 // pred_check
          %p183 = pneg %p42
        $region34: #{tpu_custom_call.1} parent=31 // pred_check_branch
          %185 = sbr.rel (%p183) target = $region36
        $region35: #{tpu_custom_call.1} parent=31 // pred_region
          %186 = dma.done %s179, 64
        $region36: #{tpu_custom_call.1} parent=31 // pred_fallthru
          _
        // Predicated region
        $region37: #{tpu_custom_call.1} parent=31 // pred_check
          %p187 = pneg %p63
        $region38: #{tpu_custom_call.1} parent=31 // pred_check_branch
          %189 = sbr.rel (%p187) target = $region40
        $region39: #{tpu_custom_call.1} parent=31 // pred_region
          %190 = dma.done [#allocation6], 768
        $region40: #{tpu_custom_call.1} parent=31 // pred_fallthru
          _
        // Predicated region
        $region41: #{tpu_custom_call.1} parent=31 // pred_check
          %p191 = pneg %p84
        $region42: #{tpu_custom_call.1} parent=31 // pred_check_branch
          %193 = sbr.rel (%p191) target = $region44
        $region43: #{tpu_custom_call.1} parent=31 // pred_region
          %194 = dma.done [#allocation6], 128
        $region44: #{tpu_custom_call.1} parent=31 // pred_fallthru
          _
        %s195 = sand.u32 %s29, 1
        %s196 = scalar_lea.sflag [#allocation3], %s195
        %s197 = sand.u32 %s29, 1
        %s198 = smul.addr %s197, 4
        %s199 = scalar_lea.vmem [#allocation2], %s198
        %p200 = pneg %p42
        %p201 = pneg %p39
        %p202 = pneg %p63
        %p203 = pneg %p60
        %p204 = pneg %p84
        %p205 = pneg %p81
        %p206 = pneg %p110
        %p207 = pneg %p107
        %s208 = sand.u32 %s97, 1
        %s209 = scalar_lea.sflag [#allocation4], %s208
        %s210 = sand.u32 %s97, 1
        %s211 = smul.addr %s210, 8
        %s212 = scalar_lea.vmem [#allocation8], %s211
        %v214 = vld [vmem:[%s182] sm:$0xf]
        %v215 = vld [vmem:[#allocation5] sm:$0xff]
        %v216 = vld [vmem:[#allocation5 + $0x8] sm:$0xf]
        %v217 = vld [vmem:[#allocation5 + $0xc] sm:$0xff]
        %v218 = vld [vmem:[#allocation5 + $0x14] sm:$0xf]
        %v219 = vld [vmem:[#allocation5 + $0x18] sm:$0xff]
        %v220 = vld [vmem:[#allocation5 + $0x20] sm:$0xf]
        %v221 = vld [vmem:[#allocation5 + $0x24] sm:$0xff]
        %v222 = vld [vmem:[#allocation5 + $0x2c] sm:$0xf]
        %v231 = vunpack.c.l.b16 %v215
        %v232 = vunpack.c.h.b16 %v215
        %v233 = vunpack.c.l.b16 %v216
        %v234 = vunpack.c.l.b16 %v217
        %v235 = vunpack.c.h.b16 %v217
        %v236 = vunpack.c.l.b16 %v218
        %v237 = vunpack.c.l.b16 %v219
        %v238 = vunpack.c.h.b16 %v219
        %v239 = vunpack.c.l.b16 %v220
        %v240 = vunpack.c.l.b16 %v221
        %v241 = vunpack.c.h.b16 %v221
        %v242 = vunpack.c.l.b16 %v222
        %v243 = vpack.c.b16 %v234, %v231
        %v244 = vpack.c.b16 %v235, %v232
        %v245 = vpack.c.b16 %v236, %v233
        %v246 = vpack.c.b16 %v240, %v237
        %v247 = vpack.c.b16 %v241, %v238
        %v248 = vpack.c.b16 %v242, %v239
        %vm255 = vcmask 261120
        %v257 = vsel %vm255, %v214, 0
        %259 = vmatprep.subr.bf16.mxu0 %v244
        %260 = vmatpush1.bf16.msra.mxu0 %v243
        %261 = vmatprep.subr.bf16.mxu0 %v247
        %262 = vmatpush1.bf16.msra.mxu0 %v246
        %263 = vmatprep.subr.bf16.mxu0 0
        %264 = vmatpush1.bf16.msra.mxu0 0
        %265 = vmatprep.subr.bf16.mxu0 0
        %266 = vmatpush1.bf16.msra.mxu0 0
        %267 = vmatprep.subr.bf16.mxu0 0
        %268 = vmatpush1.bf16.msra.mxu0 0
        %269 = vmatprep.subr.bf16.mxu0 0
        %270 = vmatpush1.bf16.msra.mxu0 0
        %271 = vmatprep.subr.bf16.mxu0 0
        %272 = vmatpush1.bf16.msra.mxu0 0
        %273 = vmatprep.subr.bf16.mxu0 0
        %274 = vmatpush1.bf16.msra.mxu0 0
        %275 = vmatprep.subr.bf16.mxu0 0
        %276 = vmatpush1.bf16.msra.mxu0 0
        %277 = vmatprep.subr.bf16.mxu0 0
        %278 = vmatpush1.bf16.msra.mxu0 0
        %279 = vmatprep.subr.bf16.mxu0 0
        %280 = vmatpush1.bf16.msra.mxu0 0
        %281 = vmatprep.subr.bf16.mxu0 0
        %282 = vmatpush1.bf16.msra.mxu0 0
        %283 = vmatprep.subr.bf16.mxu0 0
        %284 = vmatpush1.bf16.msra.mxu0 0
        %285 = vmatprep.subr.bf16.mxu0 0
        %286 = vmatpush1.bf16.msra.mxu0 0
        %287 = vmatprep.subr.bf16.mxu0 0
        %288 = vmatpush1.bf16.msra.mxu0 0
        %289 = vmatprep.subr.bf16.mxu0 0
        %290 = vmatpush1.bf16.msra.mxu0 0
        %291 = vmatprep.mubr.bf16.mxu0 0
        %292 = vmatmul.mubr.bf16.gmra.mrb[0].mxu0 %v257
        %v293 = vpop.f32.mrb[0].mxu0
        %v294 = vadd.f32 0.0, %v293
        %v295 = vpop.f32.mrb[0].mxu0
        %v296 = vadd.f32 0.0, %v295
        %v297 = vpop.f32.mrb[0].mxu0
        %v298 = vpop.f32.mrb[0].mxu0
        %299 = vdwg.mxu0
        %300 = vmatprep.subr.bf16.mxu0 0
        %301 = vmatpush1.bf16.msra.mxu0 %v245
        %302 = vmatprep.subr.bf16.mxu0 0
        %303 = vmatpush1.bf16.msra.mxu0 %v248
        %304 = vmatprep.subr.bf16.mxu0 0
        %305 = vmatpush1.bf16.msra.mxu0 0
        %306 = vmatprep.subr.bf16.mxu0 0
        %307 = vmatpush1.bf16.msra.mxu0 0
        %308 = vmatprep.subr.bf16.mxu0 0
        %309 = vmatpush1.bf16.msra.mxu0 0
        %310 = vmatprep.subr.bf16.mxu0 0
        %311 = vmatpush1.bf16.msra.mxu0 0
        %312 = vmatprep.subr.bf16.mxu0 0
        %313 = vmatpush1.bf16.msra.mxu0 0
        %314 = vmatprep.subr.bf16.mxu0 0
        %315 = vmatpush1.bf16.msra.mxu0 0
        %316 = vmatprep.subr.bf16.mxu0 0
        %317 = vmatpush1.bf16.msra.mxu0 0
        %318 = vmatprep.subr.bf16.mxu0 0
        %319 = vmatpush1.bf16.msra.mxu0 0
        %320 = vmatprep.subr.bf16.mxu0 0
        %321 = vmatpush1.bf16.msra.mxu0 0
        %322 = vmatprep.subr.bf16.mxu0 0
        %323 = vmatpush1.bf16.msra.mxu0 0
        %324 = vmatprep.subr.bf16.mxu0 0
        %325 = vmatpush1.bf16.msra.mxu0 0
        %326 = vmatprep.subr.bf16.mxu0 0
        %327 = vmatpush1.bf16.msra.mxu0 0
        %328 = vmatprep.subr.bf16.mxu0 0
        %329 = vmatpush1.bf16.msra.mxu0 0
        %330 = vmatprep.subr.bf16.mxu0 0
        %331 = vmatpush1.bf16.msra.mxu0 0
        %332 = vmatprep.mubr.bf16.mxu0 0
        %333 = vmatmul.mubr.bf16.gmra.mrb[0].mxu0 %v257
        %v334 = vpop.f32.mrb[0].mxu0
        %v335 = vadd.f32 0.0, %v334
        %v336 = vpop.f32.mrb[0].mxu0
        %v337 = vpop.f32.mrb[0].mxu0
        %v338 = vpop.f32.mrb[0].mxu0
        %339 = vdwg.mxu0
        %v340 = vld [vmem:[#allocation7] sm:$0xff]
        %341 = vmatprep.subr.mxu0 0.0
        %342 = vmatpush1.xpose.msra.mxu0 %v296
        %343 = vmatprep.subr.mxu0 0.0
        %344 = vmatpush1.xpose.msra.mxu0 0.0
        %345 = vmatprep.subr.mxu0 0.0
        %346 = vmatpush1.xpose.msra.mxu0 0.0
        %347 = vmatprep.subr.mxu0 0.0
        %348 = vmatpush1.xpose.msra.mxu0 0.0
        %349 = vmatprep.subr.mxu0 0.0
        %350 = vmatpush1.xpose.msra.mxu0 0.0
        %351 = vmatprep.subr.mxu0 0.0
        %352 = vmatpush1.xpose.msra.mxu0 0.0
        %353 = vmatprep.subr.mxu0 0.0
        %354 = vmatpush1.xpose.msra.mxu0 0.0
        %355 = vmatprep.subr.mxu0 0.0
        %356 = vmatpush1.xpose.msra.mxu0 0.0
        %357 = vmatprep.subr.mxu0 0.0
        %358 = vmatpush1.xpose.msra.mxu0 0.0
        %359 = vmatprep.subr.mxu0 0.0
        %360 = vmatpush1.xpose.msra.mxu0 0.0
        %361 = vmatprep.subr.mxu0 0.0
        %362 = vmatpush1.xpose.msra.mxu0 0.0
        %363 = vmatprep.subr.mxu0 0.0
        %364 = vmatpush1.xpose.msra.mxu0 0.0
        %365 = vmatprep.subr.mxu0 0.0
        %366 = vmatpush1.xpose.msra.mxu0 0.0
        %367 = vmatprep.subr.mxu0 0.0
        %368 = vmatpush1.xpose.msra.mxu0 0.0
        %369 = vmatprep.subr.mxu0 0.0
        %370 = vmatpush1.xpose.msra.mxu0 0.0
        %371 = vmatprep.subr.mxu0 0.0
        %372 = vmatpush1.xpose.msra.mxu0 0.0
        %373 = vmatprep.subr.mxu0 0.0
        %374 = vmatpush1.xpose.msra.mxu0 0.0
        %375 = vmatprep.subr.mxu0 0.0
        %376 = vmatpush1.xpose.msra.mxu0 0.0
        %377 = vmatprep.subr.mxu0 0.0
        %378 = vmatpush1.xpose.msra.mxu0 0.0
        %379 = vmatprep.subr.mxu0 0.0
        %380 = vmatpush1.xpose.msra.mxu0 0.0
        %381 = vmatprep.subr.mxu0 0.0
        %382 = vmatpush1.xpose.msra.mxu0 0.0
        %383 = vmatprep.subr.mxu0 0.0
        %384 = vmatpush1.xpose.msra.mxu0 0.0
        %385 = vmatprep.subr.mxu0 0.0
        %386 = vmatpush1.xpose.msra.mxu0 0.0
        %387 = vmatprep.subr.mxu0 0.0
        %388 = vmatpush1.xpose.msra.mxu0 0.0
        %389 = vmatprep.subr.mxu0 0.0
        %390 = vmatpush1.xpose.msra.mxu0 0.0
        %391 = vmatprep.subr.mxu0 0.0
        %392 = vmatpush1.xpose.msra.mxu0 0.0
        %393 = vmatprep.subr.mxu0 0.0
        %394 = vmatpush1.xpose.msra.mxu0 0.0
        %395 = vmatprep.subr.mxu0 0.0
        %396 = vmatpush1.xpose.msra.mxu0 0.0
        %397 = vmatprep.subr.mxu0 0.0
        %398 = vmatpush1.xpose.msra.mxu0 0.0
        %399 = vmatprep.subr.mxu0 0.0
        %400 = vmatpush1.xpose.msra.mxu0 0.0
        %401 = vmatprep.subr.mxu0 0.0
        %402 = vmatpush1.xpose.msra.mxu0 0.0
        %403 = vmatprep.subr.mxu0 0.0
        %404 = vmatpush1.xpose.msra.mxu0 0.0
        %405 = vmatprep.mubr.f32.mxu0 0.0
        %406 = vmatmul.mubr.f32.gmra.mrb[0].mxu0 %v294
        %v407 = vpop.f32.mrb[0].mxu0
        %v408 = vadd.f32 %v340, %v407
        %v409 = vpop.f32.mrb[0].mxu0
        %410 = vdwg.mxu0
        %vm411 = vcmask 64512
        %v412 = vsel %vm411, %v408, -inf
        %413 = vmax.xlane.f32.xlu0 %v412
        %v414 = vpop.xlane.xlu0 %413
        %v415 = vsub.f32 %v408, %v414
        %v416 = vmul.f32 %v415, 1.442695
        %v417 = vpow.pop %v416
        %v418 = vsel %vm411, %v417, 0.0
        %419 = vadd.xlane.f32.xlu0 %v418
        %v420 = vpop.xlane.xlu0 %419
        %v421 = vrcp.pop %v420
        %v422 = vmul.f32 %v417, %v421
        %v424 = vsel %vm411, %v422, 0
        %426 = vmatprep.subr.mxu0 0.0
        %427 = vmatpush1.msra.mxu0 %v335
        %428 = vmatprep.subr.mxu0 0.0
        %429 = vmatpush1.msra.mxu0 0.0
        %430 = vmatprep.subr.mxu0 0.0
        %431 = vmatpush1.msra.mxu0 0.0
        %432 = vmatprep.subr.mxu0 0.0
        %433 = vmatpush1.msra.mxu0 0.0
        %434 = vmatprep.subr.mxu0 0.0
        %435 = vmatpush1.msra.mxu0 0.0
        %436 = vmatprep.subr.mxu0 0.0
        %437 = vmatpush1.msra.mxu0 0.0
        %438 = vmatprep.subr.mxu0 0.0
        %439 = vmatpush1.msra.mxu0 0.0
        %440 = vmatprep.subr.mxu0 0.0
        %441 = vmatpush1.msra.mxu0 0.0
        %442 = vmatprep.subr.mxu0 0.0
        %443 = vmatpush1.msra.mxu0 0.0
        %444 = vmatprep.subr.mxu0 0.0
        %445 = vmatpush1.msra.mxu0 0.0
        %446 = vmatprep.subr.mxu0 0.0
        %447 = vmatpush1.msra.mxu0 0.0
        %448 = vmatprep.subr.mxu0 0.0
        %449 = vmatpush1.msra.mxu0 0.0
        %450 = vmatprep.subr.mxu0 0.0
        %451 = vmatpush1.msra.mxu0 0.0
        %452 = vmatprep.subr.mxu0 0.0
        %453 = vmatpush1.msra.mxu0 0.0
        %454 = vmatprep.subr.mxu0 0.0
        %455 = vmatpush1.msra.mxu0 0.0
        %456 = vmatprep.subr.mxu0 0.0
        %457 = vmatpush1.msra.mxu0 0.0
        %458 = vmatprep.subr.mxu0 0.0
        %459 = vmatpush1.msra.mxu0 0.0
        %460 = vmatprep.subr.mxu0 0.0
        %461 = vmatpush1.msra.mxu0 0.0
        %462 = vmatprep.subr.mxu0 0.0
        %463 = vmatpush1.msra.mxu0 0.0
        %464 = vmatprep.subr.mxu0 0.0
        %465 = vmatpush1.msra.mxu0 0.0
        %466 = vmatprep.subr.mxu0 0.0
        %467 = vmatpush1.msra.mxu0 0.0
        %468 = vmatprep.subr.mxu0 0.0
        %469 = vmatpush1.msra.mxu0 0.0
        %470 = vmatprep.subr.mxu0 0.0
        %471 = vmatpush1.msra.mxu0 0.0
        %472 = vmatprep.subr.mxu0 0.0
        %473 = vmatpush1.msra.mxu0 0.0
        %474 = vmatprep.subr.mxu0 0.0
        %475 = vmatpush1.msra.mxu0 0.0
        %476 = vmatprep.subr.mxu0 0.0
        %477 = vmatpush1.msra.mxu0 0.0
        %478 = vmatprep.subr.mxu0 0.0
        %479 = vmatpush1.msra.mxu0 0.0
        %480 = vmatprep.subr.mxu0 0.0
        %481 = vmatpush1.msra.mxu0 0.0
        %482 = vmatprep.subr.mxu0 0.0
        %483 = vmatpush1.msra.mxu0 0.0
        %484 = vmatprep.subr.mxu0 0.0
        %485 = vmatpush1.msra.mxu0 0.0
        %486 = vmatprep.subr.mxu0 0.0
        %487 = vmatpush1.msra.mxu0 0.0
        %488 = vmatprep.subr.mxu0 0.0
        %489 = vmatpush1.msra.mxu0 0.0
        %490 = vmatprep.mubr.f32.mxu0 0.0
        %491 = vmatmul.mubr.f32.gmra.mrb[0].mxu0 %v424
        %v492 = vpop.f32.mrb[0].mxu0
        %v493 = vadd.f32 0.0, %v492
        %v494 = vpop.f32.mrb[0].mxu0
        %495 = vdwg.mxu0
        %496 = vst [vmem:[%s212] sm:$0xff] %v493
        %s497 = sand.u32 %s97, 1
        %s498 = scalar_lea.sflag [#allocation4], %s497
        %s499 = sand.u32 %s97, 1
        %s500 = smul.addr %s499, 8
        %s501 = scalar_lea.vmem [#allocation8], %s500
        // Predicated region
        $region45: #{tpu_custom_call.1} parent=31 // pred_check
          %p502 = pneg %p107
        $region46: #{tpu_custom_call.1} parent=31 // pred_check_branch
          %504 = sbr.rel (%p502) target = $region48
        $region47: #{tpu_custom_call.1} parent=31 // pred_region
          %s506 = ssub.s32 128, 128
          %507 = vsyncadd %s498, %s506
          %s508 = smul.addr %s21, 128
          %s509 = scalar_lea.hbm %s3, %s508
          %s511 = sshll.u32 %s501, 4
          %s512 = int_to_ptr.vmem [resolvable:$true] %s511
          %514 = dma.vmem_to_hbm [thread:$0]  %s512, 128, %s509, %s498
        $region48: #{tpu_custom_call.1} parent=31 // pred_fallthru
          _
      $region32: #{tpu_custom_call.1} parent=5 // pred_fallthru
        _
      %p515 = scmp.le.s32.totalorder 2, %s16
      // Predicated region
      $region49: #{tpu_custom_call.1} parent=5 // pred_check
        %p516 = pneg %p515
      $region50: #{tpu_custom_call.1} parent=5 // pred_check_branch
        %518 = sbr.rel (%p516) target = $region52
      $region51: #{tpu_custom_call.1} parent=5 // pred_region
        %s519 = ssub.s32 %s16, 2
        // Predicated region
        $region53: #{tpu_custom_call.1} parent=51 // pred_check
          %p520 = pneg %p113
        $region54: #{tpu_custom_call.1} parent=51 // pred_check_branch
          %522 = sbr.rel (%p520) target = $region56
        $region55: #{tpu_custom_call.1} parent=51 // pred_region
          %s523 = sand.u32 %s98, 1
          %s524 = scalar_lea.sflag [#allocation4], %s523
          %s525 = sand.u32 %s98, 1
          %s526 = smul.addr %s525, 8
          %s527 = scalar_lea.vmem [#allocation8], %s526
          %528 = dma.done %s524, 128
        $region56: #{tpu_custom_call.1} parent=51 // pred_fallthru
          _
      $region52: #{tpu_custom_call.1} parent=5 // pred_fallthru
        _
    $region6: #{tpu_custom_call.1} parent=1 // loop_footer
      %s20 = sadd.s32 1, %s16
    $region7: #{tpu_custom_call.1} parent=1 // loop_footer_branch
      %15 = sbr.rel target = $region3
    $region8: #{tpu_custom_call.1} parent=1 // loop_exit
      _
    %529 = vsyncpa [#allocation3], 1
    %s530 = scalar_lea.sflag [#allocation3], 1
    %531 = vsyncpa %s530, 1
    %532 = vsyncpa [#allocation6], 1
    %533 = vsyncpa [#allocation4], 1
    %s534 = scalar_lea.sflag [#allocation4], 1
    %535 = vsyncpa %s534, 1

</llo_original>
